<compile_context>
chip_gen: v5e
topology: v5e:2x2
jax: 0.10.0
libtpu: 0.0.40
codegen_flags: <defaults>
</compile_context>

<pallas_src>
import jax
import jax.numpy as jnp
from jax.experimental import pallas as pl
from jax.experimental.pallas import tpu as pltpu


def _round_up(x: int, m: int) -> int:
    return (x + m - 1) // m * m


def cp_attention_kernel(rep_ref, w_ref, fcw_ref, fcb_ref, out_ref):
    """CPAttention forward for one batch tile.

    rep_ref : (L, TB, Hp)  input dtype (f32 or bf16), layer-major
    w_ref   : (1, Hp)      grid-resident, input dtype
    fcw_ref : (Hp, Cp)     grid-resident, input dtype (torch weight transposed)
    fcb_ref : (1, Cp)      grid-resident, f32
    out_ref : (TB, Cp)     f32
    """
    L = rep_ref.shape[0]
    w = w_ref[...]                                            # (1, Hp)

    # Pass 1: per-layer attention scores  s[l,b] = sum_h tanh(rep[l,b,h]) * w[h]
    # One (TB, Hp) slice at a time -> no full-tile temporaries; the lane
    # reduction accumulates directly in f32.
    scores = []
    for l in range(L):
        m = jnp.tanh(rep_ref[l])                              # (TB, Hp)
        scores.append(jnp.sum(m * w, axis=-1, keepdims=True,
                              dtype=jnp.float32))             # (TB, 1) f32

    # Numerically-stable softmax over the layer axis (normalization deferred).
    s_max = scores[0]
    for l in range(1, L):
        s_max = jnp.maximum(s_max, scores[l])
    exps = [jnp.exp(s - s_max) for s in scores]               # L x (TB, 1) f32
    sum_e = exps[0]
    for l in range(1, L):
        sum_e = sum_e + exps[l]

    # Pass 2: weighted sum over layers, widening one layer slice at a time.
    pooled = rep_ref[0].astype(jnp.float32) * exps[0]         # (TB, Hp) f32
    for l in range(1, L):
        pooled = pooled + rep_ref[l].astype(jnp.float32) * exps[l]

    # Exact normalization (scale > 0, so it commutes with ReLU) + ReLU.
    pooled = jnp.maximum(pooled * (1.0 / sum_e), 0.0)         # (TB, Hp) f32

    # Final linear head on the MXU: operands stay in the input dtype
    # (bf16-native MXU rate), accumulation in f32.  Cp is a 128-multiple.
    logits = jnp.dot(pooled.astype(fcw_ref.dtype), fcw_ref[...],
                     preferred_element_type=jnp.float32)      # (TB, Cp) f32
    out_ref[...] = logits + fcb_ref[...]


def _choose_batch_tile(B, bytes_per_row, budget):
    """Pick a batch tile that divides B (no pad copy, no dead rows)."""
    if B % 8 != 0:
        # Small / ragged batch: take the whole batch as one full-extent block
        # (legal for a non-multiple-of-8 sublane dim) as long as it fits.
        if B * bytes_per_row <= 2 * budget:
            return B
        return None  # large ragged batch: caller pads to a multiple of 8
    cap_rows = max(8, (budget // max(1, bytes_per_row)) // 8 * 8)
    cap = min(cap_rows, B)
    if B >= 16:
        cap = min(cap, B // 2)  # keep >= 2 grid steps so megacore has work
    cap = max(cap, 8)
    tb = 8
    for d in range(8, cap + 1, 8):
        if B % d == 0:
            tb = d
    return tb


def cp_attention(rep, w, fc_w, fc_b, *, batch_tile=None):
    """rep: (L, B, H) layer-major; w: (H,); fc_w: (H, C) (torch weight.T); fc_b: (C,)."""
    L, B, H = rep.shape
    C = fc_w.shape[1]
    dtype = rep.dtype
    itemsize = jnp.dtype(dtype).itemsize

    # Lane-dense padding of hidden / class dims (zeros are exact no-ops for
    # tanh / softmax-score / pooled / fc contributions).
    Hp = _round_up(H, 128)
    Cp = _round_up(C, 128)

    # Generation-aware per-buffer rep-tile budget (Pallas double-buffers it):
    # ~12.8 MiB on 128 MiB VMEM parts (v5e/v6e), ~6.4 MiB on v7x (64 MiB).
    try:
        vmem_cap = int(pltpu.get_tpu_info().vmem_capacity_bytes)
    except Exception:
        vmem_cap = 128 * 1024 * 1024
    budget = max(2 << 20, vmem_cap // 10)

    bytes_per_row = L * Hp * itemsize

    Bp = B
    if batch_tile is not None:
        TB = batch_tile
        Bp = _round_up(B, TB)
    else:
        TB = _choose_batch_tile(B, bytes_per_row, budget)
        if TB is None:
            # Large batch that is not a multiple of 8: pad minimally to 8.
            Bp = _round_up(B, 8)
            TB = _choose_batch_tile(Bp, bytes_per_row, budget)

    # Zero-pad inputs (only where actually needed; real BERT-style H needs no
    # H pad, and the batch axis is only padded in the large-ragged fallback).
    if Bp != B or Hp != H:
        rep = jnp.pad(rep, ((0, 0), (0, Bp - B), (0, Hp - H)))
    if Hp != H:
        w = jnp.pad(w, (0, Hp - H))
        fc_w = jnp.pad(fc_w, ((0, Hp - H), (0, 0)))
    if Cp != C:
        fc_w = jnp.pad(fc_w, ((0, 0), (0, Cp - C)))
        fc_b = jnp.pad(fc_b, (0, Cp - C))

    # Weight dtype policy: matmul operands in the input dtype, bias in f32.
    w = w.astype(dtype).reshape(1, Hp)
    fc_w = fc_w.astype(dtype)
    fc_b = fc_b.astype(jnp.float32).reshape(1, Cp)

    grid = (Bp // TB,)

    # Honest VMEM accounting: sublane padding of the batch-tile axis and the
    # in-kernel f32 temporaries, double-buffered in/out blocks, weights.
    sub = max(8, 32 // itemsize)                    # 8 for f32, 16 for bf16
    tb_in = _round_up(TB, sub)
    tb_out = _round_up(TB, 8)
    rep_tile_bytes = L * tb_in * Hp * itemsize
    out_tile_bytes = tb_out * Cp * 4
    weight_bytes = (Hp * Cp + sub * Hp) * itemsize + 8 * Cp * 4
    temp_bytes = 3 * tb_in * Hp * 4
    vmem_need = 2 * (rep_tile_bytes + out_tile_bytes + weight_bytes) + temp_bytes
    vmem_cap_usable = min(int(vmem_cap * 3 // 4), vmem_cap - (16 << 20))
    vmem_limit = int(min(vmem_cap_usable,
                         max(16 * 1024 * 1024, vmem_need + (4 << 20))))

    cost = pl.CostEstimate(
        flops=int(2 * Bp * Hp * Cp + 4 * Bp * L * Hp),
        transcendentals=int(Bp * L * Hp + Bp * L),
        bytes_accessed=int(Bp * L * Hp * itemsize
                           + (Hp * Cp + Hp) * itemsize + Cp * 4
                           + Bp * Cp * 4),
    )

    out = pl.pallas_call(
        cp_attention_kernel,
        out_shape=jax.ShapeDtypeStruct((Bp, Cp), jnp.float32),
        grid_spec=pltpu.PrefetchScalarGridSpec(
            num_scalar_prefetch=0,
            grid=grid,
            in_specs=[
                pl.BlockSpec((L, TB, Hp), lambda b: (0, b, 0)),   # streamed rep
                pl.BlockSpec((1, Hp), lambda b: (0, 0)),          # resident w
                pl.BlockSpec((Hp, Cp), lambda b: (0, 0)),         # resident fc_w
                pl.BlockSpec((1, Cp), lambda b: (0, 0)),          # resident fc_b
            ],
            out_specs=pl.BlockSpec((TB, Cp), lambda b: (b, 0)),
        ),
        compiler_params=pltpu.CompilerParams(
            dimension_semantics=("parallel",),
            vmem_limit_bytes=vmem_limit,
        ),
        cost_estimate=cost,
    )(rep, w, fc_w, fc_b)

    return out[:B, :C]


def cp_attention_ref(rep_lbh, w, fc_w, fc_b):
    """Pure-JAX reference matching the PyTorch CPAttention.forward."""
    rep = jnp.transpose(rep_lbh, (1, 0, 2))                   # (B, L, H) as in torch
    m = jnp.tanh(rep)
    alpha = jax.nn.softmax(jnp.einsum("blh,h->bl", m, w), axis=1)[..., None]
    out = jnp.sum(rep * alpha, axis=1)
    out = jax.nn.relu(out)
    return out @ fc_w + fc_b


def extract_rep(hidden_states, mask_pos, layer_start):
    """Plain-JAX glue: per-layer hidden state at the single <mask> position.

    hidden_states: (num_layers, B, S, H), mask_pos: (B,) int -> rep (L, B, H).
    Layer-major output so the kernel needs no transpose of the hot data.
    """
    # TODO(synk): this gather could be fused into the kernel via scalar-prefetched
    # mask_pos + manual make_async_copy from hidden_states (memory_space=pl.ANY)
    # to avoid materializing rep in HBM; kept in XLA for robustness.
    layers = hidden_states[layer_start:]                              # (L, B, S, H)
    L, B, S, H = layers.shape
    idx = jnp.broadcast_to(mask_pos[None, :, None, None], (L, B, 1, H))
    rep = jnp.take_along_axis(layers, idx, axis=2)                    # (L, B, 1, H)
    return jnp.squeeze(rep, axis=2)                                   # (L, B, H)


if __name__ == "__main__":
    key = jax.random.PRNGKey(0)
    k_h, k_w, k_fw, k_fb = jax.random.split(key, 4)

    # Small, module-consistent shapes.
    B, S, H = 2, 16, 32          # batch, seq_len, hidden_size
    num_layers_total = 6
    layer_start = 2              # args.layer_num
    num_class = 5
    L = num_layers_total - layer_start   # stacked layers fed to the attention

    # TODO(synk): the real PromptModel/PLM + verbalizer have no Pallas
    # equivalent; we synthesize its hidden_states directly.
    hidden_states = jax.random.normal(
        k_h, (num_layers_total, B, S, H), dtype=jnp.float32)
    mask_pos = jnp.array([3, 7], dtype=jnp.int32)  # one <mask> per example (loss_ids > 0)

    # Glue: extract_at_mask per layer, stacked layer-major -> (L, B, H)
    rep = extract_rep(hidden_states, mask_pos, layer_start)

    # Deterministic parameter init (CPAttention.__init__ shapes).
    # Note: torch inits w as zeros; we use a small random vector so the
    # attention weights are non-trivial while remaining deterministic.
    w = 0.1 * jax.random.normal(k_w, (H,), dtype=jnp.float32)
    fc_w = 0.1 * jax.random.normal(k_fw, (H, num_class), dtype=jnp.float32)  # (H,C) = torch (C,H).T
    fc_b = 0.1 * jax.random.normal(k_fb, (num_class,), dtype=jnp.float32)

    logits = cp_attention(rep, w, fc_w, fc_b)
    logits = jax.block_until_ready(logits)

    ref = cp_attention_ref(rep, w, fc_w, fc_b)
    assert logits.shape == (B, num_class), logits.shape
    assert jnp.allclose(logits, ref, atol=1e-4, rtol=1e-4), (logits, ref)

    print("KERNEL_OK")
</pallas_src>

<mosaic_0001>
module attributes {stable_mosaic.version = 11 : i64} {
  func.func @cp_attention_kernel(%arg0: i32, %arg1: memref<4x2x128xf32, #tpu.memory_space<vmem>>, %arg2: memref<1x128xf32, #tpu.memory_space<vmem>>, %arg3: memref<128x128xf32, #tpu.memory_space<vmem>>, %arg4: memref<1x128xf32, #tpu.memory_space<vmem>>, %arg5: memref<2x128xf32, #tpu.memory_space<vmem>>) attributes {dimension_semantics = [#tpu.dimension_semantics<parallel>], iteration_bounds = array<i64: 1>, scalar_prefetch = 0 : i64, scratch_operands = 0 : i64, tpu.core_type = #tpu.core_type<tc>, window_params = [{transform_indices = @transform_0, window_bounds = array<i64: 4, 2, 128>}, {pipeline_mode = #tpu.pipeline_mode<synchronous>, transform_indices = @transform_1, window_bounds = array<i64: 1, 128>}, {pipeline_mode = #tpu.pipeline_mode<synchronous>, transform_indices = @transform_2, window_bounds = array<i64: 128, 128>}, {pipeline_mode = #tpu.pipeline_mode<synchronous>, transform_indices = @transform_3, window_bounds = array<i64: 1, 128>}, {transform_indices = @transform_4, window_bounds = array<i64: 2, 128>}]} {
    %c0 = arith.constant 0 : index
    %c0_0 = arith.constant 0 : index
    %0 = vector.load %arg2[%c0, %c0_0] : memref<1x128xf32, #tpu.memory_space<vmem>>, vector<1x128xf32>
    %c0_1 = arith.constant 0 : index
    %c0_2 = arith.constant 0 : index
    %c0_3 = arith.constant 0 : index
    %1 = vector.load %arg1[%c0_1, %c0_2, %c0_3] : memref<4x2x128xf32, #tpu.memory_space<vmem>>, vector<1x2x128xf32>
    %2 = vector.shape_cast %1 : vector<1x2x128xf32> to vector<2x128xf32>
    %3 = math.tanh %2 : vector<2x128xf32>
    %4 = vector.broadcast %0 : vector<1x128xf32> to vector<2x128xf32>
    %5 = arith.mulf %3, %4 : vector<2x128xf32>
    %cst = arith.constant dense<0.000000e+00> : vector<2xf32>
    %6 = vector.multi_reduction <add>, %5, %cst [1] : vector<2x128xf32> to vector<2xf32>
    %7 = vector.shape_cast %6 : vector<2xf32> to vector<2x1xf32>
    %c1 = arith.constant 1 : index
    %c0_4 = arith.constant 0 : index
    %c0_5 = arith.constant 0 : index
    %8 = vector.load %arg1[%c1, %c0_4, %c0_5] : memref<4x2x128xf32, #tpu.memory_space<vmem>>, vector<1x2x128xf32>
    %9 = vector.shape_cast %8 : vector<1x2x128xf32> to vector<2x128xf32>
    %10 = math.tanh %9 : vector<2x128xf32>
    %11 = vector.broadcast %0 : vector<1x128xf32> to vector<2x128xf32>
    %12 = arith.mulf %10, %11 : vector<2x128xf32>
    %cst_6 = arith.constant dense<0.000000e+00> : vector<2xf32>
    %13 = vector.multi_reduction <add>, %12, %cst_6 [1] : vector<2x128xf32> to vector<2xf32>
    %14 = vector.shape_cast %13 : vector<2xf32> to vector<2x1xf32>
    %c2 = arith.constant 2 : index
    %c0_7 = arith.constant 0 : index
    %c0_8 = arith.constant 0 : index
    %15 = vector.load %arg1[%c2, %c0_7, %c0_8] : memref<4x2x128xf32, #tpu.memory_space<vmem>>, vector<1x2x128xf32>
    %16 = vector.shape_cast %15 : vector<1x2x128xf32> to vector<2x128xf32>
    %17 = math.tanh %16 : vector<2x128xf32>
    %18 = vector.broadcast %0 : vector<1x128xf32> to vector<2x128xf32>
    %19 = arith.mulf %17, %18 : vector<2x128xf32>
    %cst_9 = arith.constant dense<0.000000e+00> : vector<2xf32>
    %20 = vector.multi_reduction <add>, %19, %cst_9 [1] : vector<2x128xf32> to vector<2xf32>
    %21 = vector.shape_cast %20 : vector<2xf32> to vector<2x1xf32>
    %c3 = arith.constant 3 : index
    %c0_10 = arith.constant 0 : index
    %c0_11 = arith.constant 0 : index
    %22 = vector.load %arg1[%c3, %c0_10, %c0_11] : memref<4x2x128xf32, #tpu.memory_space<vmem>>, vector<1x2x128xf32>
    %23 = vector.shape_cast %22 : vector<1x2x128xf32> to vector<2x128xf32>
    %24 = math.tanh %23 : vector<2x128xf32>
    %25 = vector.broadcast %0 : vector<1x128xf32> to vector<2x128xf32>
    %26 = arith.mulf %24, %25 : vector<2x128xf32>
    %cst_12 = arith.constant dense<0.000000e+00> : vector<2xf32>
    %27 = vector.multi_reduction <add>, %26, %cst_12 [1] : vector<2x128xf32> to vector<2xf32>
    %28 = vector.shape_cast %27 : vector<2xf32> to vector<2x1xf32>
    %29 = arith.maximumf %7, %14 : vector<2x1xf32>
    %30 = arith.maximumf %29, %21 : vector<2x1xf32>
    %31 = arith.maximumf %30, %28 : vector<2x1xf32>
    %32 = arith.subf %7, %31 : vector<2x1xf32>
    %33 = math.exp %32 : vector<2x1xf32>
    %34 = arith.subf %14, %31 : vector<2x1xf32>
    %35 = math.exp %34 : vector<2x1xf32>
    %36 = arith.subf %21, %31 : vector<2x1xf32>
    %37 = math.exp %36 : vector<2x1xf32>
    %38 = arith.subf %28, %31 : vector<2x1xf32>
    %39 = math.exp %38 : vector<2x1xf32>
    %40 = arith.addf %33, %35 : vector<2x1xf32>
    %41 = arith.addf %40, %37 : vector<2x1xf32>
    %42 = arith.addf %41, %39 : vector<2x1xf32>
    %c0_13 = arith.constant 0 : index
    %c0_14 = arith.constant 0 : index
    %c0_15 = arith.constant 0 : index
    %43 = vector.load %arg1[%c0_13, %c0_14, %c0_15] : memref<4x2x128xf32, #tpu.memory_space<vmem>>, vector<1x2x128xf32>
    %44 = vector.shape_cast %43 : vector<1x2x128xf32> to vector<2x128xf32>
    %45 = vector.broadcast %33 : vector<2x1xf32> to vector<2x128xf32>
    %46 = arith.mulf %44, %45 : vector<2x128xf32>
    %c1_16 = arith.constant 1 : index
    %c0_17 = arith.constant 0 : index
    %c0_18 = arith.constant 0 : index
    %47 = vector.load %arg1[%c1_16, %c0_17, %c0_18] : memref<4x2x128xf32, #tpu.memory_space<vmem>>, vector<1x2x128xf32>
    %48 = vector.shape_cast %47 : vector<1x2x128xf32> to vector<2x128xf32>
    %49 = vector.broadcast %35 : vector<2x1xf32> to vector<2x128xf32>
    %50 = arith.mulf %48, %49 : vector<2x128xf32>
    %51 = arith.addf %46, %50 : vector<2x128xf32>
    %c2_19 = arith.constant 2 : index
    %c0_20 = arith.constant 0 : index
    %c0_21 = arith.constant 0 : index
    %52 = vector.load %arg1[%c2_19, %c0_20, %c0_21] : memref<4x2x128xf32, #tpu.memory_space<vmem>>, vector<1x2x128xf32>
    %53 = vector.shape_cast %52 : vector<1x2x128xf32> to vector<2x128xf32>
    %54 = vector.broadcast %37 : vector<2x1xf32> to vector<2x128xf32>
    %55 = arith.mulf %53, %54 : vector<2x128xf32>
    %56 = arith.addf %51, %55 : vector<2x128xf32>
    %c3_22 = arith.constant 3 : index
    %c0_23 = arith.constant 0 : index
    %c0_24 = arith.constant 0 : index
    %57 = vector.load %arg1[%c3_22, %c0_23, %c0_24] : memref<4x2x128xf32, #tpu.memory_space<vmem>>, vector<1x2x128xf32>
    %58 = vector.shape_cast %57 : vector<1x2x128xf32> to vector<2x128xf32>
    %59 = vector.broadcast %39 : vector<2x1xf32> to vector<2x128xf32>
    %60 = arith.mulf %58, %59 : vector<2x128xf32>
    %61 = arith.addf %56, %60 : vector<2x128xf32>
    %cst_25 = arith.constant 1.000000e+00 : f32
    %62 = vector.broadcast %cst_25 : f32 to vector<2x1xf32>
    %63 = arith.divf %62, %42 : vector<2x1xf32>
    %64 = vector.broadcast %63 : vector<2x1xf32> to vector<2x128xf32>
    %65 = arith.mulf %61, %64 : vector<2x128xf32>
    %cst_26 = arith.constant 0.000000e+00 : f32
    %66 = vector.broadcast %cst_26 : f32 to vector<2x128xf32>
    %67 = arith.maximumf %65, %66 : vector<2x128xf32>
    %c0_27 = arith.constant 0 : index
    %c0_28 = arith.constant 0 : index
    %68 = vector.load %arg3[%c0_27, %c0_28] : memref<128x128xf32, #tpu.memory_space<vmem>>, vector<128x128xf32>
    %cst_29 = arith.constant dense<0.000000e+00> : vector<2x128xf32>
    %69 = tpu.matmul %67, %68, %cst_29 {dimension_numbers = #tpu.dot_dimension_numbers<[1], [0], [0], [1], [0, 0, 1, 1], [], []>} : vector<2x128xf32>, vector<128x128xf32>, vector<2x128xf32> -> vector<2x128xf32>
    %c0_30 = arith.constant 0 : index
    %c0_31 = arith.constant 0 : index
    %70 = vector.load %arg4[%c0_30, %c0_31] : memref<1x128xf32, #tpu.memory_space<vmem>>, vector<1x128xf32>
    %71 = vector.broadcast %70 : vector<1x128xf32> to vector<2x128xf32>
    %72 = arith.addf %69, %71 : vector<2x128xf32>
    %c0_32 = arith.constant 0 : index
    %c0_33 = arith.constant 0 : index
    %73 = vector.load %arg5[%c0_32, %c0_33] : memref<2x128xf32, #tpu.memory_space<vmem>>, vector<2x128xf32>
    tpu.vector_store %arg5[%c0_32, %c0_33], %72 {strides = array<i32>} : memref<2x128xf32, #tpu.memory_space<vmem>>, vector<2x128xf32>,
    return
  }
  func.func @transform_0(%arg0: i32) -> (i32, i32, i32) {
    %c0_i32 = arith.constant 0 : i32
    %c0_i32_0 = arith.constant 0 : i32
    %c0_i32_1 = arith.constant 0 : i32
    return %c0_i32, %arg0, %c0_i32_0 : i32, i32, i32
  }
  func.func @transform_1(%arg0: i32) -> (i32, i32) {
    %c0_i32 = arith.constant 0 : i32
    %c0_i32_0 = arith.constant 0 : i32
    %c0_i32_1 = arith.constant 0 : i32
    return %c0_i32, %c0_i32_0 : i32, i32
  }
  func.func @transform_2(%arg0: i32) -> (i32, i32) {
    %c0_i32 = arith.constant 0 : i32
    %c0_i32_0 = arith.constant 0 : i32
    %c0_i32_1 = arith.constant 0 : i32
    return %c0_i32, %c0_i32_0 : i32, i32
  }
  func.func @transform_3(%arg0: i32) -> (i32, i32) {
    %c0_i32 = arith.constant 0 : i32
    %c0_i32_0 = arith.constant 0 : i32
    %c0_i32_1 = arith.constant 0 : i32
    return %c0_i32, %c0_i32_0 : i32, i32
  }
  func.func @transform_4(%arg0: i32) -> (i32, i32) {
    %c0_i32 = arith.constant 0 : i32
    %c0_i32_0 = arith.constant 0 : i32
    return %arg0, %c0_i32 : i32, i32
  }
}

</mosaic_0001>

<llo_original>
// kernel: tpu_custom_call.1
$region0: #{tpu_custom_call.1}
  #allocation0 [shape = 'u32[]', space=smem, size = 0x4, offset = 0x4, fixed_abs, tag = 'smem constant byte address 0x4 - core index']
  #allocation1 [shape = 'u32[72,128]{1,0:T(1,128)}', space=vmem, size = 0x9000, scoped, tag = 'internal scratch']
  %s0 = inlined_call_operand.hbm [shape: f32[4,2,128], index: 0, kind: input, shape index: {}]
  %s1 = inlined_call_operand.hbm [shape: f32[1,128], index: 1, kind: input, shape index: {}]
  %s2 = inlined_call_operand.hbm [shape: f32[128,128], index: 2, kind: input, shape index: {}]
  %s3 = inlined_call_operand.vmem [shape: f32[1,128], index: 3, kind: input, shape index: {}]
  %s4 = inlined_call_operand.hbm [shape: f32[2,128], index: 4, kind: output, shape index: {}]
  %s5 = sld [smem:[#allocation0]]
  $region38: #{tpu_custom_call.1} parent=0
    _
  %s7 = ssub.s32 1, %s5
  %s8 = scalar_select 0, %s7, %s5
  $region1: #{tpu_custom_call.1} parent=0
    #allocation2 [shape = 'u8[4096]{0}', space=vmem, size = 0x1000, scoped, tag = 'input window, operand 0, single buffered']
    #allocation3 [shape = 's32[1]{0}', space=sflag, size = 0x4, scoped, tag = 'scoped memory for tpu_custom_call.1']
    #allocation4 [shape = 's32[1]{0}', space=sflag, size = 0x4, scoped, tag = 'scoped memory for tpu_custom_call.1']
    #allocation5 [shape = 'u8[512]{0}', space=vmem, size = 0x400, scoped, tag = 'input window, operand 1, single buffered']
    #allocation6 [shape = 's32[1]{0}', space=sflag, size = 0x4, scoped, tag = 'scoped memory for tpu_custom_call.1']
    #allocation7 [shape = 'u8[65536]{0}', space=vmem, size = 0x10000, scoped, tag = 'input window, operand 2, single buffered']
    #allocation8 [shape = 'u8[1024]{0}', space=vmem, size = 0x400, scoped, tag = 'output window, operand 0, single buffered']
    %9 = vsyncpa [#allocation3], 0
    %10 = vsyncpa [#allocation6], 0
    %11 = vsyncpa [#allocation4], 0
    // Predicated region
    $region2: #{tpu_custom_call.1} parent=1 // pred_check
      _
    $region3: #{tpu_custom_call.1} parent=1 // pred_check_branch
      %13 = sbr.rel (0) target = $region5
    $region4: #{tpu_custom_call.1} parent=1 // pred_region
      %15 = vsyncadd [#allocation3], 0
      %s16 = sshll.u32 %s0, 4
      %s17 = int_to_ptr.hbm [resolvable:$true] %s16
      %s18 = sshll.u32 [#allocation2], 4
      %s19 = int_to_ptr.vmem [resolvable:$true] %s18
      %24 = dma.hbm_to_vmem [thread:$0]  %s17, 128, %s19, [#allocation3], 32, 32, 2
    $region5: #{tpu_custom_call.1} parent=1 // pred_fallthru
      _
    // Predicated region
    $region6: #{tpu_custom_call.1} parent=1 // pred_check
      _
    $region7: #{tpu_custom_call.1} parent=1 // pred_check_branch
      %26 = sbr.rel (0) target = $region9
    $region8: #{tpu_custom_call.1} parent=1 // pred_region
      %28 = vsyncadd [#allocation6], 0
      %s30 = sshll.u32 %s1, 4
      %s31 = int_to_ptr.hbm [resolvable:$true] %s30
      %s32 = sshll.u32 [#allocation5], 4
      %s33 = int_to_ptr.vmem [resolvable:$true] %s32
      %35 = dma.hbm_to_vmem [thread:$0]  %s31, 16, %s33, [#allocation6]
    $region9: #{tpu_custom_call.1} parent=1 // pred_fallthru
      _
    // Predicated region
    $region10: #{tpu_custom_call.1} parent=1 // pred_check
      _
    $region11: #{tpu_custom_call.1} parent=1 // pred_check_branch
      %37 = sbr.rel (0) target = $region13
    $region12: #{tpu_custom_call.1} parent=1 // pred_region
      %39 = vsyncadd [#allocation6], 0
      %s40 = sshll.u32 %s2, 4
      %s41 = int_to_ptr.hbm [resolvable:$true] %s40
      %s42 = sshll.u32 [#allocation7], 4
      %s43 = int_to_ptr.vmem [resolvable:$true] %s42
      %48 = dma.hbm_to_vmem [thread:$0]  %s41, 2048, %s43, [#allocation6], 128, 128, 8
    $region13: #{tpu_custom_call.1} parent=1 // pred_fallthru
      _
    // Predicated region
    $region14: #{tpu_custom_call.1} parent=1 // pred_check
      _
    $region15: #{tpu_custom_call.1} parent=1 // pred_check_branch
      %50 = sbr.rel (0) target = $region17
    $region16: #{tpu_custom_call.1} parent=1 // pred_region
      _
    $region17: #{tpu_custom_call.1} parent=1 // pred_fallthru
      _
    // Predicated region
    $region18: #{tpu_custom_call.1} parent=1 // pred_check
      _
    $region19: #{tpu_custom_call.1} parent=1 // pred_check_branch
      %52 = sbr.rel (0) target = $region21
    $region20: #{tpu_custom_call.1} parent=1 // pred_region
      %54 = dma.done [#allocation3], 128
    $region21: #{tpu_custom_call.1} parent=1 // pred_fallthru
      _
    // Predicated region
    $region22: #{tpu_custom_call.1} parent=1 // pred_check
      _
    $region23: #{tpu_custom_call.1} parent=1 // pred_check_branch
      %56 = sbr.rel (0) target = $region25
    $region24: #{tpu_custom_call.1} parent=1 // pred_region
      %58 = dma.done [#allocation6], 16
    $region25: #{tpu_custom_call.1} parent=1 // pred_fallthru
      _
    // Predicated region
    $region26: #{tpu_custom_call.1} parent=1 // pred_check
      _
    $region27: #{tpu_custom_call.1} parent=1 // pred_check_branch
      %60 = sbr.rel (0) target = $region29
    $region28: #{tpu_custom_call.1} parent=1 // pred_region
      %62 = dma.done [#allocation6], 2048
    $region29: #{tpu_custom_call.1} parent=1 // pred_fallthru
      _
    %v63 = vld [vmem:[#allocation5] sm:$0x1]
    %v64 = vld [vmem:[#allocation2] sm:$0x3]
    %v65 = vtanh.pop %v64
    %v67 = vperm.slane %v63, 0
    %v69 = vmul.f32 %v65, %v67
    %vm70 = vcmask 1041408
    %v71 = vsel %vm70, %v69, 0.0
    %72 = vadd.xlane.f32.xlu0 %v71
    %v73 = vpop.xlane.xlu0 %72
    %s74 = scalar_lea.vmem [#allocation2], 2
    %v75 = vld [vmem:[%s74] sm:$0x3]
    %v76 = vtanh.pop %v75
    %v77 = vmul.f32 %v76, %v67
    %v78 = vsel %vm70, %v77, 0.0
    %79 = vadd.xlane.f32.xlu0 %v78
    %v80 = vpop.xlane.xlu0 %79
    %s81 = scalar_lea.vmem [#allocation2], 4
    %v82 = vld [vmem:[%s81] sm:$0x3]
    %v83 = vtanh.pop %v82
    %v84 = vmul.f32 %v83, %v67
    %v85 = vsel %vm70, %v84, 0.0
    %86 = vadd.xlane.f32.xlu0 %v85
    %v87 = vpop.xlane.xlu0 %86
    %s88 = scalar_lea.vmem [#allocation2], 6
    %v89 = vld [vmem:[%s88] sm:$0x3]
    %v90 = vtanh.pop %v89
    %v91 = vmul.f32 %v90, %v67
    %v92 = vsel %vm70, %v91, 0.0
    %93 = vadd.xlane.f32.xlu0 %v92
    %v94 = vpop.xlane.xlu0 %93
    %v95 = vmax.f32 %v73, %v80
    %v96 = vmax.f32 %v95, %v87
    %v97 = vmax.f32 %v96, %v94
    %v98 = vsub.f32 %v73, %v97
    %v99 = vmul.f32 %v98, 1.442695
    %v100 = vpow.pop %v99
    %v101 = vsub.f32 %v80, %v97
    %v102 = vmul.f32 %v101, 1.442695
    %v103 = vpow.pop %v102
    %v104 = vsub.f32 %v87, %v97
    %v105 = vmul.f32 %v104, 1.442695
    %v106 = vpow.pop %v105
    %v107 = vsub.f32 %v94, %v97
    %v108 = vmul.f32 %v107, 1.442695
    %v109 = vpow.pop %v108
    %v110 = vadd.f32 %v100, %v103
    %v111 = vadd.f32 %v110, %v106
    %v112 = vadd.f32 %v111, %v109
    %v113 = vmul.f32 %v64, %v100
    %v114 = vmul.f32 %v75, %v103
    %v115 = vadd.f32 %v113, %v114
    %v116 = vmul.f32 %v82, %v106
    %v117 = vadd.f32 %v115, %v116
    %v118 = vmul.f32 %v89, %v109
    %v119 = vadd.f32 %v117, %v118
    %v120 = vrcp.pop %v112
    %v121 = vmul.f32 %v112, %v120
    %v122 = vsub.f32 1.0, %v121
    %v123 = vmul.f32 %v120, %v122
    %v124 = vadd.f32 %v120, %v123
    %vm125 = vweird.f32 %v112
    %vm126 = vweird.f32 %v120
    %vm127 = vmor %vm125, %vm126
    %v128 = vsel %vm127, %v120, %v124
    %v129 = vand.u32 2147483647, %v112
    %vm130 = vcmp.eq.f32.partialorder %v129, 8.507059e+37
    %v131 = vand.u32 %v112, 2147483648
    %v132 = vor.u32 1.1754944e-38, %v131
    %v133 = vsel %vm130, %v132, %v128
    %v134 = vmul.f32 1.0, %v133
    %v135 = vmul.f32 %v119, %v134
    %v136 = vmax.f32 %v135, 0.0
    %v137 = vld [vmem:[#allocation7] sm:$0xff]
    %v138 = vld [vmem:[#allocation7 + $0x8] sm:$0xff]
    %v139 = vld [vmem:[#allocation7 + $0x10] sm:$0xff]
    %v140 = vld [vmem:[#allocation7 + $0x18] sm:$0xff]
    %v141 = vld [vmem:[#allocation7 + $0x20] sm:$0xff]
    %v142 = vld [vmem:[#allocation7 + $0x28] sm:$0xff]
    %v143 = vld [vmem:[#allocation7 + $0x30] sm:$0xff]
    %v144 = vld [vmem:[#allocation7 + $0x38] sm:$0xff]
    %v145 = vld [vmem:[#allocation7 + $0x40] sm:$0xff]
    %v146 = vld [vmem:[#allocation7 + $0x48] sm:$0xff]
    %v147 = vld [vmem:[#allocation7 + $0x50] sm:$0xff]
    %v148 = vld [vmem:[#allocation7 + $0x58] sm:$0xff]
    %v149 = vld [vmem:[#allocation7 + $0x60] sm:$0xff]
    %v150 = vld [vmem:[#allocation7 + $0x68] sm:$0xff]
    %v151 = vld [vmem:[#allocation7 + $0x70] sm:$0xff]
    %v152 = vld [vmem:[#allocation7 + $0x78] sm:$0xff]
    %v153 = vld [vmem:[%s3] sm:$0x1]
    %v155 = vperm.slane %v153, 0
    %157 = vmatpush.msra.mxu0 %v152
    %158 = vmatpush.msra.mxu0 %v151
    %159 = vmatpush.msra.mxu0 %v150
    %160 = vmatpush.msra.mxu0 %v149
    %161 = vmatpush.msra.mxu0 %v148
    %162 = vmatpush.msra.mxu0 %v147
    %163 = vmatpush.msra.mxu0 %v146
    %164 = vmatpush.msra.mxu0 %v145
    %165 = vmatpush.msra.mxu0 %v144
    %166 = vmatpush.msra.mxu0 %v143
    %167 = vmatpush.msra.mxu0 %v142
    %168 = vmatpush.msra.mxu0 %v141
    %169 = vmatpush.msra.mxu0 %v140
    %170 = vmatpush.msra.mxu0 %v139
    %171 = vmatpush.msra.mxu0 %v138
    %172 = vmatpush.msra.mxu0 %v137
    %173 = vmatmul.f32.gmra.mxu0 %v136
    %v174 = vpop.f32.mrf.mxu0
    %v175 = vadd.f32 %v155, %v174
    %176 = vdwg.mxu0
    %177 = vst [vmem:[#allocation8] sm:$0x3] %v175
    // Predicated region
    $region30: #{tpu_custom_call.1} parent=1 // pred_check
      _
    $region31: #{tpu_custom_call.1} parent=1 // pred_check_branch
      %179 = sbr.rel (0) target = $region33
    $region32: #{tpu_custom_call.1} parent=1 // pred_region
      %181 = vsyncadd [#allocation4], 0
      %s183 = sshll.u32 [#allocation8], 4
      %s184 = int_to_ptr.vmem [resolvable:$true] %s183
      %s185 = sshll.u32 %s4, 4
      %s186 = int_to_ptr.hbm [resolvable:$true] %s185
      %188 = dma.vmem_to_hbm [thread:$0]  %s184, 32, %s186, [#allocation4]
    $region33: #{tpu_custom_call.1} parent=1 // pred_fallthru
      _
    // Predicated region
    $region34: #{tpu_custom_call.1} parent=1 // pred_check
      _
    $region35: #{tpu_custom_call.1} parent=1 // pred_check_branch
      %190 = sbr.rel (0) target = $region37
    $region36: #{tpu_custom_call.1} parent=1 // pred_region
      %192 = dma.done [#allocation4], 32
    $region37: #{tpu_custom_call.1} parent=1 // pred_fallthru
      _
    %193 = vsyncpa [#allocation3], 1
    %194 = vsyncpa [#allocation6], 1
    %195 = vsyncpa [#allocation4], 1

</llo_original>
